<compile_context>
chip_gen: v5e
topology: v5e:2x2
jax: 0.10.0
libtpu: 0.0.40
codegen_flags: <defaults>
</compile_context>

<pallas_src>
import jax
import jax.numpy as jnp
from jax import lax
from jax.experimental import pallas as pl
from jax.experimental.pallas import tpu as pltpu

BN_EPS = 1e-5
CDTYPE = jnp.bfloat16   # storage / MXU-input dtype on the activation path


# ---------------------------------------------------------------------------
# Small helpers
# ---------------------------------------------------------------------------
def _tile_size(n, max_t):
    """Largest divisor of n that is <= max_t and a multiple of 8 (or n itself)."""
    if n <= max_t:
        return n
    for t in range(max_t - max_t % 8, 7, -8):
        if n % t == 0:
            return t
    return n


_BUFFERED_PROBE = None


def _weight_pipeline_mode():
    """pl.Buffered(1) for constant weight blocks, if this jax/Mosaic supports it."""
    global _BUFFERED_PROBE
    if _BUFFERED_PROBE is None:
        try:
            mode = pl.Buffered(1)

            def _probe_kernel(x_ref, o_ref):
                o_ref[...] = x_ref[...] + 1.0

            out = pl.pallas_call(
                _probe_kernel,
                out_shape=jax.ShapeDtypeStruct((8, 128), jnp.float32),
                grid=(1,),
                in_specs=[pl.BlockSpec((8, 128), lambda i: (0, 0),
                                       pipeline_mode=mode)],
                out_specs=pl.BlockSpec((8, 128), lambda i: (0, 0)),
            )(jnp.zeros((8, 128), jnp.float32))
            jax.block_until_ready(out)
            _BUFFERED_PROBE = (mode,)
        except Exception:
            _BUFFERED_PROBE = (None,)
    return _BUFFERED_PROBE[0]


def _wspec(shape, ngrid=1):
    """BlockSpec for a constant (weight/scale/shift) input: same block every step,
    single-buffered when supported."""
    zeros = (0,) * len(shape)
    if ngrid == 1:
        imap = lambda b: zeros
    else:
        imap = lambda b, n: zeros
    mode = _weight_pipeline_mode()
    if mode is not None:
        return pl.BlockSpec(shape, imap, pipeline_mode=mode)
    return pl.BlockSpec(shape, imap)


def _vmem_limit_bytes():
    """Per-generation scoped VMEM limit (~100 MiB on 128 MiB parts, ~56 MiB on v7x)."""
    cap = None
    try:
        cap = int(pltpu.get_tpu_info().vmem_capacity_bytes)
    except Exception:
        try:
            kind = jax.devices()[0].device_kind.lower()
            cap = 64 * 1024 * 1024 if ("v7" in kind or "7x" in kind) else 128 * 1024 * 1024
        except Exception:
            cap = 64 * 1024 * 1024
    return int(min(cap - 8 * 1024 * 1024, 100 * 1024 * 1024))


# ---------------------------------------------------------------------------
# Kernels
# ---------------------------------------------------------------------------
def _stem_kernel(x_ref, w1_ref, s1_ref, b1_ref, w2_ref, s2_ref, b2_ref, o_ref):
    """conv1(9->128)+BN+ReLU fused with conv2(128->128)+BN+ReLU (one (b, N-tile))."""
    x = x_ref[0]                                                      # (TN, 9) bf16
    h = jnp.dot(x, w1_ref[...], preferred_element_type=jnp.float32)   # (TN, 128)
    h = jnp.maximum(h * s1_ref[...] + b1_ref[...], 0.0)
    h = jnp.dot(h.astype(CDTYPE), w2_ref[...],
                preferred_element_type=jnp.float32)
    h = jnp.maximum(h * s2_ref[...] + b2_ref[...], 0.0)
    o_ref[0] = h.astype(o_ref.dtype)


def _stage_kernel(xc_ref, fc_ref, wmsf_ref, ms_ref, mb_ref, mk_ref,
                  wqv_ref, bqv_ref, wt_ref, ts_ref, tb_ref, o_ref):
    """msf block (single 256-wide matmul + BN + ReLU, mask-based rolled channel mix)
    fused with one SA_Layer (tied q/k, row-tiled attention with folded softmax
    normalizations, residual)."""
    xc = xc_ref[0]                                                    # (N, C) bf16
    fc = fc_ref[0]                                                    # (N, C) bf16
    N, C = xc.shape

    # ---- msf right branch: relu(BN(cat(x, f) @ Wmsf)), one K=2C matmul ----
    xcat = jnp.concatenate([xc, fc], axis=1)                          # (N, 2C) bf16
    r = jnp.dot(xcat, wmsf_ref[...], preferred_element_type=jnp.float32)
    x_right = jnp.maximum(r * ms_ref[...] + mb_ref[...], 0.0)         # (N, C) f32

    # ---- msf left branch: +-1 rolls along N, disjoint 0/mu channel masks ----
    # (rolls kept in f32: unaligned sublane slices of packed bf16 are riskier to
    #  lower and the XLU has slack in this kernel)
    xcf = xc.astype(jnp.float32)
    fcf = fc.astype(jnp.float32)
    mk = mk_ref[...]                                                  # (4, C) f32
    x = (jnp.roll(xcf, -1, axis=0) * mk[0:1]
         + jnp.roll(xcf, 1, axis=0) * mk[1:2]
         + jnp.roll(fcf, -1, axis=0) * mk[2:3]
         + jnp.roll(fcf, 1, axis=0) * mk[3:4]
         + x_right)                                                   # (N, C) f32

    # TODO(synk): SpatialTransformerLayer (spatial_attention) is not defined in
    # the reference source; treated as identity here.

    # ---- SA_Layer: packed q|v projection (one 256-wide matmul) ----
    xb = x.astype(CDTYPE)
    qv = jnp.dot(xb, wqv_ref[...], preferred_element_type=jnp.float32) + bqv_ref[...]
    q_all = qv[:, :C].astype(CDTYPE)     # (N, C); only first C//4 lanes are nonzero
    v_all = qv[:, C:]                    # (N, C) f32

    # Row-tiled attention.  For each query-row tile (full key dim is resident):
    #   e = exp(energy - rowmax),  rr = 1/rowsum(e)
    #   col_sum[j] += sum_i rr[i]*e[i,j]          (MXU matvec)
    #   num[j,:]   += sum_i e[i,j]*(rr[i]*v[i,:]) (MXU)
    # then x_r = (1/(1e-9+col_sum)) * num  -- no (N,N) f32 matrix, no full
    # element-wise renormalization passes.
    TQ = _tile_size(N, 512)
    ones_n = jnp.ones((N, 1), CDTYPE)
    col_sum = None
    num = None
    for t in range(N // TQ):
        q_t = q_all[t * TQ:(t + 1) * TQ]                              # (TQ, C) bf16
        v_t = v_all[t * TQ:(t + 1) * TQ]                              # (TQ, C) f32
        energy = lax.dot_general(q_t, q_all, (((1,), (1,)), ((), ())),
                                 preferred_element_type=jnp.float32)  # (TQ, N)
        m = jnp.max(energy, axis=-1, keepdims=True)
        e = jnp.exp((energy - m).astype(CDTYPE))                      # bf16 exp (EUP)
        rs = lax.dot_general(e, ones_n, (((1,), (0,)), ((), ())),
                             preferred_element_type=jnp.float32)      # (TQ, 1)
        rr = pl.reciprocal(rs, approx=True)                           # (TQ, 1) f32
        cs = lax.dot_general(e, rr.astype(CDTYPE), (((0,), (0,)), ((), ())),
                             preferred_element_type=jnp.float32)      # (N, 1)
        vw = (rr * v_t).astype(CDTYPE)                                # (TQ, C) bf16
        nm = lax.dot_general(e, vw, (((0,), (0,)), ((), ())),
                             preferred_element_type=jnp.float32)      # (N, C)
        col_sum = cs if col_sum is None else col_sum + cs
        num = nm if num is None else num + nm

    x_r = pl.reciprocal(1e-9 + col_sum, approx=True) * num            # (N, C) f32
    h = (x - x_r).astype(CDTYPE)
    t2 = jnp.dot(h, wt_ref[...], preferred_element_type=jnp.float32)
    x_r2 = jnp.maximum(t2 * ts_ref[...] + tb_ref[...], 0.0)           # BN + ReLU
    o_ref[0] = (x + x_r2).astype(o_ref.dtype)


def _head_kernel(x1_ref, x2_ref, x3_ref, x4_ref,
                 wf_ref, fs_ref, fb_ref,
                 w1a_ref, w1b_ref, w1c_ref, s1_ref, b1_ref,
                 w2_ref, s2_ref, b2_ref, w3_ref, b3_ref, o_ref):
    """conv_fuse + LeakyReLU + global max/mean pooling + convs1/2/3 (eval mode),
    one batch element.  convs3 output is padded to 128 lanes (sliced outside)."""
    xcat = jnp.concatenate([x1_ref[0], x2_ref[0], x3_ref[0], x4_ref[0]], axis=1)
    npts = xcat.shape[0]
    acc = jnp.dot(xcat, wf_ref[...], preferred_element_type=jnp.float32)  # (N, 1024)
    xf = acc * fs_ref[...] + fb_ref[...]
    xf = jnp.where(xf > 0.0, xf, 0.2 * xf)                            # LeakyReLU(0.2)

    # global pooling fused here (no HBM round trip of the (N,1024) activation)
    x_max = jnp.max(xf, axis=0, keepdims=True)                        # (1, 1024)
    x_avg = jnp.sum(xf, axis=0, keepdims=True) * (1.0 / npts)         # (1, 1024)
    xfb = xf.astype(CDTYPE)                                           # shorten f32 live range

    # convs1 with split weight: per-point part + tiny per-batch global part
    g = jnp.dot(x_max.astype(CDTYPE), w1b_ref[...],
                preferred_element_type=jnp.float32)
    g = g + jnp.dot(x_avg.astype(CDTYPE), w1c_ref[...],
                    preferred_element_type=jnp.float32)                # (1, 512)
    y1 = jnp.dot(xfb, w1a_ref[...], preferred_element_type=jnp.float32) + g
    y1 = jnp.maximum(y1 * s1_ref[...] + b1_ref[...], 0.0)              # BN + ReLU
    # dp1 (Dropout 0.5) is identity in eval mode
    y2 = jnp.dot(y1.astype(CDTYPE), w2_ref[...],
                 preferred_element_type=jnp.float32)
    y2 = jnp.maximum(y2 * s2_ref[...] + b2_ref[...], 0.0)
    y3 = jnp.dot(y2.astype(CDTYPE), w3_ref[...],
                 preferred_element_type=jnp.float32) + b3_ref[...]     # (N, 128) padded
    o_ref[0] = y3.astype(o_ref.dtype)


# ---------------------------------------------------------------------------
# pallas_call wrappers
# ---------------------------------------------------------------------------
def stem(x_bnc, p1, p2, vmem):
    B, N, Cin = x_bnc.shape
    w1, s1, b1 = p1
    w2, s2, b2 = p2
    TN = _tile_size(N, 1024)
    grid = (B, N // TN)
    ng = 2
    return pl.pallas_call(
        _stem_kernel,
        out_shape=jax.ShapeDtypeStruct((B, N, 128), CDTYPE),
        grid=grid,
        in_specs=[
            pl.BlockSpec((1, TN, Cin), lambda b, n: (b, n, 0)),
            _wspec(w1.shape, ng), _wspec(s1.shape, ng), _wspec(b1.shape, ng),
            _wspec(w2.shape, ng), _wspec(s2.shape, ng), _wspec(b2.shape, ng),
        ],
        out_specs=pl.BlockSpec((1, TN, 128), lambda b, n: (b, n, 0)),
        compiler_params=pltpu.CompilerParams(
            dimension_semantics=("parallel", "parallel"),
            vmem_limit_bytes=vmem),
    )(x_bnc, w1, s1, b1, w2, s2, b2)


def stage(xc, fc, pmsf, masks, psa, vmem):
    B, N, C = xc.shape
    wmsf, ms, mb = pmsf
    imap_x = lambda b: (b, 0, 0)
    return pl.pallas_call(
        _stage_kernel,
        out_shape=jax.ShapeDtypeStruct((B, N, C), CDTYPE),
        grid=(B,),
        in_specs=[
            pl.BlockSpec((1, N, C), imap_x),
            pl.BlockSpec((1, N, C), imap_x),
            _wspec(wmsf.shape), _wspec(ms.shape), _wspec(mb.shape),
            _wspec(masks.shape),
            _wspec(psa["w_qv"].shape), _wspec(psa["b_qv"].shape),
            _wspec(psa["wt"].shape), _wspec(psa["tscale"].shape),
            _wspec(psa["tshift"].shape),
        ],
        out_specs=pl.BlockSpec((1, N, C), imap_x),
        compiler_params=pltpu.CompilerParams(
            dimension_semantics=("parallel",),
            vmem_limit_bytes=vmem),
    )(xc, fc, wmsf, ms, mb, masks, psa["w_qv"], psa["b_qv"],
      psa["wt"], psa["tscale"], psa["tshift"])


def head(x1, x2, x3, x4, P, vmem):
    B, N, C = x1.shape
    wf, fs_, fb = P["conv_fuse"]
    w1a, w1b, w1c, s1, b1 = P["convs1"]
    w2, s2, b2 = P["convs2"]
    w3, b3 = P["convs3"]
    xspec = pl.BlockSpec((1, N, C), lambda b: (b, 0, 0))
    return pl.pallas_call(
        _head_kernel,
        out_shape=jax.ShapeDtypeStruct((B, N, 128), jnp.float32),
        grid=(B,),
        in_specs=[
            xspec, xspec, xspec, xspec,
            _wspec(wf.shape), _wspec(fs_.shape), _wspec(fb.shape),
            _wspec(w1a.shape), _wspec(w1b.shape), _wspec(w1c.shape),
            _wspec(s1.shape), _wspec(b1.shape),
            _wspec(w2.shape), _wspec(s2.shape), _wspec(b2.shape),
            _wspec(w3.shape), _wspec(b3.shape),
        ],
        out_specs=pl.BlockSpec((1, N, 128), lambda b: (b, 0, 0)),
        compiler_params=pltpu.CompilerParams(
            dimension_semantics=("parallel",),
            vmem_limit_bytes=vmem),
    )(x1, x2, x3, x4, wf, fs_, fb, w1a, w1b, w1c, s1, b1, w2, s2, b2, w3, b3)


# ---------------------------------------------------------------------------
# Parameter construction (deterministic, PyTorch-style fan-in uniform init)
# ---------------------------------------------------------------------------
def _conv1d_wb(key, cout, cin, bias):
    kw, kb = jax.random.split(key)
    bound = 1.0 / (cin ** 0.5)
    w = jax.random.uniform(kw, (cout, cin), jnp.float32, -bound, bound)
    if bias:
        b = jax.random.uniform(kb, (cout,), jnp.float32, -bound, bound)
    else:
        b = jnp.zeros((cout,), jnp.float32)
    return w, b


def _bn_fold(bias, cout):
    # BN eval with default stats: gamma=1, beta=0, running_mean=0, running_var=1
    gamma = jnp.ones((cout,), jnp.float32)
    beta = jnp.zeros((cout,), jnp.float32)
    rm = jnp.zeros((cout,), jnp.float32)
    rv = jnp.ones((cout,), jnp.float32)
    scale = gamma / jnp.sqrt(rv + BN_EPS)
    shift = scale * (bias - rm) + beta
    return scale, shift


def _fold(w, b, bn=True):
    """(Cout,Cin) weight -> pre-transposed bf16 (Cin,Cout) + f32 (1,Cout) scale/shift."""
    cout = w.shape[0]
    if bn:
        scale, shift = _bn_fold(b, cout)
    else:
        scale, shift = jnp.ones((cout,), jnp.float32), b
    wt = jnp.transpose(w).astype(CDTYPE)
    return (wt,
            scale.reshape(1, cout).astype(jnp.float32),
            shift.reshape(1, cout).astype(jnp.float32))


def _sa_params(key):
    k1, k2, k3 = jax.random.split(key, 3)
    wq, _ = _conv1d_wb(k1, 32, 128, bias=False)        # shared q/k weight
    wv, bv = _conv1d_wb(k2, 128, 128, bias=True)
    wtr, bt = _conv1d_wb(k3, 128, 128, bias=True)
    tscale, tshift = _bn_fold(bt, 128)                 # after_norm folded
    # pack q (zero-padded to a clean 128-lane boundary) and v into one (128,256)
    # weight: one full-width MXU matmul produces both projections; the zero q
    # columns contribute nothing to q@q^T.
    wq_pad = jnp.zeros((128, 128), jnp.float32).at[:, :32].set(jnp.transpose(wq))
    w_qv = jnp.concatenate([wq_pad, jnp.transpose(wv)], axis=1).astype(CDTYPE)
    b_qv = jnp.concatenate([jnp.zeros((128,), jnp.float32), bv]).reshape(1, 256)
    return dict(w_qv=w_qv,
                b_qv=b_qv.astype(jnp.float32),
                wt=jnp.transpose(wtr).astype(CDTYPE),
                tscale=tscale.reshape(1, 128).astype(jnp.float32),
                tshift=tshift.reshape(1, 128).astype(jnp.float32))


def init_params(key, num_class=3):
    keys = iter(jax.random.split(key, 32))

    def conv(cout, cin, bias, bn=True):
        w, b = _conv1d_wb(next(keys), cout, cin, bias)
        return _fold(w, b, bn)

    P = {"num_class": num_class}
    P["conv1"] = conv(128, 9, bias=False)
    P["conv2"] = conv(128, 128, bias=False)

    # msf blocks: whole (256,128) bf16 weight (input is the in-kernel lane concat),
    # plus four disjoint 0/mu channel masks replacing iota/compare/select.
    mus = [0.2, 0.15, 0.1, 0.1]
    lane = jnp.arange(128)
    group = lane // 32
    base_masks = (group[None, :] == jnp.arange(4)[:, None]).astype(jnp.float32)
    for i in range(1, 5):
        P[f"msf{i}"] = conv(128, 256, bias=False)      # (256,128) bf16, (1,128)x2
        P[f"mask{i}"] = base_masks * mus[i - 1]        # (4,128) f32

    P["conv_fuse"] = conv(1024, 512, bias=False)       # (512,1024) bf16

    wt, s, sh = conv(512, 1024 * 3, bias=True)         # (3072,512) bf16
    P["convs1"] = (wt[:1024], wt[1024:2048], wt[2048:], s, sh)

    P["convs2"] = conv(256, 512, bias=True)

    wt3, _, sh3 = conv(num_class, 256, bias=True, bn=False)  # (256,num_class)
    w3 = jnp.zeros((256, 128), CDTYPE).at[:, :num_class].set(wt3)
    b3 = jnp.zeros((1, 128), jnp.float32).at[:, :num_class].set(sh3)
    P["convs3"] = (w3, b3)                             # lane-dense padded head

    for i in range(1, 5):
        P[f"sa{i}"] = _sa_params(next(keys))
    return P


# ---------------------------------------------------------------------------
# Forward pass (eval mode)
# ---------------------------------------------------------------------------
def forward(P, x_ncw, f1_ncw, f2_ncw, f3_ncw, f4_ncw):
    # NCW -> channels-last (B, N, C), bf16 on the activation path
    x = jnp.transpose(x_ncw, (0, 2, 1)).astype(CDTYPE)
    fs = [jnp.transpose(f, (0, 2, 1)).astype(CDTYPE)
          for f in (f1_ncw, f2_ncw, f3_ncw, f4_ncw)]
    vmem = _vmem_limit_bytes()

    x = stem(x, P["conv1"], P["conv2"], vmem)

    # each stage = msf block (+ identity spatial_attention) + SA_Layer, fused
    x1 = stage(x, fs[0], P["msf1"], P["mask1"], P["sa1"], vmem)
    x2 = stage(x1, fs[1], P["msf2"], P["mask2"], P["sa2"], vmem)
    x3 = stage(x2, fs[2], P["msf3"], P["mask3"], P["sa3"], vmem)
    x4 = stage(x3, fs[3], P["msf4"], P["mask4"], P["sa4"], vmem)

    # conv_fuse + global pooling + convs1/2/3 fused (convs3 padded to 128 lanes)
    y_pad = head(x1, x2, x3, x4, P, vmem)
    y = y_pad[..., :P["num_class"]]                    # (B, N, num_class)
    # reference permutes (0, 2, 1) back to (B, N, num_class) — already there.
    return y, None


# ---------------------------------------------------------------------------
if __name__ == "__main__":
    key = jax.random.PRNGKey(0)
    kp, kx, k1, k2, k3, k4 = jax.random.split(key, 6)

    B, N = 2, 128
    x = jax.random.normal(kx, (B, 9, N), jnp.float32)
    f1 = jax.random.normal(k1, (B, 128, N), jnp.float32)
    f2 = jax.random.normal(k2, (B, 128, N), jnp.float32)
    f3 = jax.random.normal(k3, (B, 128, N), jnp.float32)
    f4 = jax.random.normal(k4, (B, 128, N), jnp.float32)

    params = init_params(kp, num_class=3)
    out, assist = forward(params, x, f1, f2, f3, f4)
    out = jax.block_until_ready(out)

    assert out.shape == (B, N, 3), out.shape
    assert assist is None
    assert bool(jnp.all(jnp.isfinite(out)))
    print("KERNEL_OK")
</pallas_src>

<mosaic_0001>
module attributes {stable_mosaic.version = 11 : i64} {
  func.func @_probe_kernel(%arg0: i32, %arg1: memref<8x128xf32, #tpu.memory_space<vmem>>, %arg2: memref<8x128xf32, #tpu.memory_space<vmem>>) attributes {dimension_semantics = [#tpu.dimension_semantics<arbitrary>], iteration_bounds = array<i64: 1>, scalar_prefetch = 0 : i64, scratch_operands = 0 : i64, tpu.core_type = #tpu.core_type<tc>, window_params = [{pipeline_mode = #tpu.pipeline_mode<synchronous>, transform_indices = @transform_0, window_bounds = array<i64: 8, 128>}, {pipeline_mode = #tpu.pipeline_mode<synchronous>, transform_indices = @transform_1, window_bounds = array<i64: 8, 128>}]} {
    %c0 = arith.constant 0 : index
    %c0_0 = arith.constant 0 : index
    %0 = vector.load %arg1[%c0, %c0_0] : memref<8x128xf32, #tpu.memory_space<vmem>>, vector<8x128xf32>
    %cst = arith.constant 1.000000e+00 : f32
    %1 = vector.broadcast %cst : f32 to vector<8x128xf32>
    %2 = arith.addf %0, %1 : vector<8x128xf32>
    %c0_1 = arith.constant 0 : index
    %c0_2 = arith.constant 0 : index
    %3 = vector.load %arg2[%c0_1, %c0_2] : memref<8x128xf32, #tpu.memory_space<vmem>>, vector<8x128xf32>
    tpu.vector_store %arg2[%c0_1, %c0_2], %2 {strides = array<i32>} : memref<8x128xf32, #tpu.memory_space<vmem>>, vector<8x128xf32>,
    return
  }
  func.func @transform_0(%arg0: i32) -> (i32, i32) {
    %c0_i32 = arith.constant 0 : i32
    %c0_i32_0 = arith.constant 0 : i32
    %c0_i32_1 = arith.constant 0 : i32
    return %c0_i32, %c0_i32_0 : i32, i32
  }
  func.func @transform_1(%arg0: i32) -> (i32, i32) {
    %c0_i32 = arith.constant 0 : i32
    %c0_i32_0 = arith.constant 0 : i32
    %c0_i32_1 = arith.constant 0 : i32
    return %c0_i32, %c0_i32_0 : i32, i32
  }
}

module attributes {stable_mosaic.version = 11 : i64} {
  func.func @_stem_kernel(%arg0: i32, %arg1: i32, %arg2: memref<1x128x9xbf16, #tpu.memory_space<vmem>>, %arg3: memref<9x128xbf16, #tpu.memory_space<vmem>>, %arg4: memref<1x128xf32, #tpu.memory_space<vmem>>, %arg5: memref<1x128xf32, #tpu.memory_space<vmem>>, %arg6: memref<128x128xbf16, #tpu.memory_space<vmem>>, %arg7: memref<1x128xf32, #tpu.memory_space<vmem>>, %arg8: memref<1x128xf32, #tpu.memory_space<vmem>>, %arg9: memref<1x128x128xbf16, #tpu.memory_space<vmem>>) attributes {dimension_semantics = [#tpu.dimension_semantics<parallel>, #tpu.dimension_semantics<parallel>], iteration_bounds = array<i64: 2, 1>, scalar_prefetch = 0 : i64, scratch_operands = 0 : i64, tpu.core_type = #tpu.core_type<tc>, window_params = [{transform_indices = @transform_0, window_bounds = array<i64: 1, 128, 9>}, {pipeline_mode = #tpu.pipeline_mode<synchronous>, transform_indices = @transform_1, window_bounds = array<i64: 9, 128>}, {pipeline_mode = #tpu.pipeline_mode<synchronous>, transform_indices = @transform_2, window_bounds = array<i64: 1, 128>}, {pipeline_mode = #tpu.pipeline_mode<synchronous>, transform_indices = @transform_3, window_bounds = array<i64: 1, 128>}, {pipeline_mode = #tpu.pipeline_mode<synchronous>, transform_indices = @transform_4, window_bounds = array<i64: 128, 128>}, {pipeline_mode = #tpu.pipeline_mode<synchronous>, transform_indices = @transform_5, window_bounds = array<i64: 1, 128>}, {pipeline_mode = #tpu.pipeline_mode<synchronous>, transform_indices = @transform_6, window_bounds = array<i64: 1, 128>}, {transform_indices = @transform_7, window_bounds = array<i64: 1, 128, 128>}]} {
    %c0 = arith.constant 0 : index
    %c0_0 = arith.constant 0 : index
    %c0_1 = arith.constant 0 : index
    %0 = vector.load %arg2[%c0, %c0_0, %c0_1] : memref<1x128x9xbf16, #tpu.memory_space<vmem>>, vector<1x128x9xbf16>
    %1 = vector.shape_cast %0 : vector<1x128x9xbf16> to vector<128x9xbf16>
    %c0_2 = arith.constant 0 : index
    %c0_3 = arith.constant 0 : index
    %2 = vector.load %arg3[%c0_2, %c0_3] : memref<9x128xbf16, #tpu.memory_space<vmem>>, vector<9x128xbf16>
    %cst = arith.constant dense<0.000000e+00> : vector<128x128xf32>
    %3 = tpu.matmul %1, %2, %cst {dimension_numbers = #tpu.dot_dimension_numbers<[1], [0], [0], [1], [0, 0, 1, 1], [], []>} : vector<128x9xbf16>, vector<9x128xbf16>, vector<128x128xf32> -> vector<128x128xf32>
    %c0_4 = arith.constant 0 : index
    %c0_5 = arith.constant 0 : index
    %4 = vector.load %arg4[%c0_4, %c0_5] : memref<1x128xf32, #tpu.memory_space<vmem>>, vector<1x128xf32>
    %5 = vector.broadcast %4 : vector<1x128xf32> to vector<128x128xf32>
    %6 = arith.mulf %3, %5 : vector<128x128xf32>
    %c0_6 = arith.constant 0 : index
    %c0_7 = arith.constant 0 : index
    %7 = vector.load %arg5[%c0_6, %c0_7] : memref<1x128xf32, #tpu.memory_space<vmem>>, vector<1x128xf32>
    %8 = vector.broadcast %7 : vector<1x128xf32> to vector<128x128xf32>
    %9 = arith.addf %6, %8 : vector<128x128xf32>
    %cst_8 = arith.constant 0.000000e+00 : f32
    %10 = vector.broadcast %cst_8 : f32 to vector<128x128xf32>
    %11 = arith.maximumf %9, %10 : vector<128x128xf32>
    %12 = arith.truncf %11 : vector<128x128xf32> to vector<128x128xbf16>
    %c0_9 = arith.constant 0 : index
    %c0_10 = arith.constant 0 : index
    %13 = vector.load %arg6[%c0_9, %c0_10] : memref<128x128xbf16, #tpu.memory_space<vmem>>, vector<128x128xbf16>
    %cst_11 = arith.constant dense<0.000000e+00> : vector<128x128xf32>
    %14 = tpu.matmul %12, %13, %cst_11 {dimension_numbers = #tpu.dot_dimension_numbers<[1], [0], [0], [1], [0, 0, 1, 1], [], []>} : vector<128x128xbf16>, vector<128x128xbf16>, vector<128x128xf32> -> vector<128x128xf32>
    %c0_12 = arith.constant 0 : index
    %c0_13 = arith.constant 0 : index
    %15 = vector.load %arg7[%c0_12, %c0_13] : memref<1x128xf32, #tpu.memory_space<vmem>>, vector<1x128xf32>
    %16 = vector.broadcast %15 : vector<1x128xf32> to vector<128x128xf32>
    %17 = arith.mulf %14, %16 : vector<128x128xf32>
    %c0_14 = arith.constant 0 : index
    %c0_15 = arith.constant 0 : index
    %18 = vector.load %arg8[%c0_14, %c0_15] : memref<1x128xf32, #tpu.memory_space<vmem>>, vector<1x128xf32>
    %19 = vector.broadcast %18 : vector<1x128xf32> to vector<128x128xf32>
    %20 = arith.addf %17, %19 : vector<128x128xf32>
    %cst_16 = arith.constant 0.000000e+00 : f32
    %21 = vector.broadcast %cst_16 : f32 to vector<128x128xf32>
    %22 = arith.maximumf %20, %21 : vector<128x128xf32>
    %23 = arith.truncf %22 : vector<128x128xf32> to vector<128x128xbf16>
    %c0_17 = arith.constant 0 : index
    %c0_18 = arith.constant 0 : index
    %c0_19 = arith.constant 0 : index
    %24 = vector.load %arg9[%c0_17, %c0_18, %c0_19] : memref<1x128x128xbf16, #tpu.memory_space<vmem>>, vector<1x128x128xbf16>
    %25 = vector.shape_cast %24 : vector<1x128x128xbf16> to vector<128x128xbf16>
    %26 = vector.shape_cast %23 : vector<128x128xbf16> to vector<1x128x128xbf16>
    tpu.vector_store %arg9[%c0_17, %c0_18, %c0_19], %26 {strides = array<i32>} : memref<1x128x128xbf16, #tpu.memory_space<vmem>>, vector<1x128x128xbf16>,
    return
  }
  func.func @transform_0(%arg0: i32, %arg1: i32) -> (i32, i32, i32) {
    %c0_i32 = arith.constant 0 : i32
    %c0_i32_0 = arith.constant 0 : i32
    return %arg0, %arg1, %c0_i32 : i32, i32, i32
  }
  func.func @transform_1(%arg0: i32, %arg1: i32) -> (i32, i32) {
    %c0_i32 = arith.constant 0 : i32
    %c0_i32_0 = arith.constant 0 : i32
    %c0_i32_1 = arith.constant 0 : i32
    return %c0_i32, %c0_i32_0 : i32, i32
  }
  func.func @transform_2(%arg0: i32, %arg1: i32) -> (i32, i32) {
    %c0_i32 = arith.constant 0 : i32
    %c0_i32_0 = arith.constant 0 : i32
    %c0_i32_1 = arith.constant 0 : i32
    return %c0_i32, %c0_i32_0 : i32, i32
  }
  func.func @transform_3(%arg0: i32, %arg1: i32) -> (i32, i32) {
    %c0_i32 = arith.constant 0 : i32
    %c0_i32_0 = arith.constant 0 : i32
    %c0_i32_1 = arith.constant 0 : i32
    return %c0_i32, %c0_i32_0 : i32, i32
  }
  func.func @transform_4(%arg0: i32, %arg1: i32) -> (i32, i32) {
    %c0_i32 = arith.constant 0 : i32
    %c0_i32_0 = arith.constant 0 : i32
    %c0_i32_1 = arith.constant 0 : i32
    return %c0_i32, %c0_i32_0 : i32, i32
  }
  func.func @transform_5(%arg0: i32, %arg1: i32) -> (i32, i32) {
    %c0_i32 = arith.constant 0 : i32
    %c0_i32_0 = arith.constant 0 : i32
    %c0_i32_1 = arith.constant 0 : i32
    return %c0_i32, %c0_i32_0 : i32, i32
  }
  func.func @transform_6(%arg0: i32, %arg1: i32) -> (i32, i32) {
    %c0_i32 = arith.constant 0 : i32
    %c0_i32_0 = arith.constant 0 : i32
    %c0_i32_1 = arith.constant 0 : i32
    return %c0_i32, %c0_i32_0 : i32, i32
  }
  func.func @transform_7(%arg0: i32, %arg1: i32) -> (i32, i32, i32) {
    %c0_i32 = arith.constant 0 : i32
    %c0_i32_0 = arith.constant 0 : i32
    return %arg0, %arg1, %c0_i32 : i32, i32, i32
  }
}

</mosaic_0001>

<llo_original>
// kernel: tpu_custom_call.1
$region0: #{tpu_custom_call.1}
  #allocation0 [shape = 'u32[]', space=smem, size = 0x4, offset = 0x4, fixed_abs, tag = 'smem constant byte address 0x4 - core index']
  #allocation1 [shape = 'u32[72,128]{1,0:T(1,128)}', space=vmem, size = 0x9000, scoped, tag = 'internal scratch']
  %s0 = inlined_call_operand.hbm [shape: f32[8,128], index: 0, kind: input, shape index: {}]
  %s1 = inlined_call_operand.hbm [shape: f32[8,128], index: 1, kind: output, shape index: {}]
  %s2 = sld [smem:[#allocation0]]
  $region18: #{tpu_custom_call.1} parent=0
    _
  %s4 = ssub.s32 1, %s2
  %s5 = scalar_select 0, %s4, %s2
  $region1: #{tpu_custom_call.1} parent=0
    #allocation2 [shape = 'u8[4096]{0}', space=vmem, size = 0x1000, scoped, tag = 'input window, operand 0, single buffered']
    #allocation3 [shape = 's32[1]{0}', space=sflag, size = 0x4, scoped, tag = 'scoped memory for tpu_custom_call.1']
    #allocation4 [shape = 's32[1]{0}', space=sflag, size = 0x4, scoped, tag = 'scoped memory for tpu_custom_call.1']
    #allocation5 [shape = 'u8[4096]{0}', space=vmem, size = 0x1000, scoped, tag = 'output window, operand 0, single buffered']
    %6 = vsyncpa [#allocation3], 0
    %7 = vsyncpa [#allocation4], 0
    // Predicated region
    $region2: #{tpu_custom_call.1} parent=1 // pred_check
      _
    $region3: #{tpu_custom_call.1} parent=1 // pred_check_branch
      %9 = sbr.rel (0) target = $region5
    $region4: #{tpu_custom_call.1} parent=1 // pred_region
      %11 = vsyncadd [#allocation3], 0
      %s13 = sshll.u32 %s0, 4
      %s14 = int_to_ptr.hbm [resolvable:$true] %s13
      %s15 = sshll.u32 [#allocation2], 4
      %s16 = int_to_ptr.vmem [resolvable:$true] %s15
      %18 = dma.hbm_to_vmem [thread:$0]  %s14, 128, %s16, [#allocation3]
    $region5: #{tpu_custom_call.1} parent=1 // pred_fallthru
      _
    // Predicated region
    $region6: #{tpu_custom_call.1} parent=1 // pred_check
      _
    $region7: #{tpu_custom_call.1} parent=1 // pred_check_branch
      %20 = sbr.rel (0) target = $region9
    $region8: #{tpu_custom_call.1} parent=1 // pred_region
      %22 = dma.done [#allocation3], 128
    $region9: #{tpu_custom_call.1} parent=1 // pred_fallthru
      _
    %v23 = vld [vmem:[#allocation2] sm:$0xff]
    %v24 = vadd.f32 %v23, 1.0
    %25 = vst [vmem:[#allocation5] sm:$0xff] %v24
    // Predicated region
    $region10: #{tpu_custom_call.1} parent=1 // pred_check
      _
    $region11: #{tpu_custom_call.1} parent=1 // pred_check_branch
      %27 = sbr.rel (0) target = $region13
    $region12: #{tpu_custom_call.1} parent=1 // pred_region
      %29 = vsyncadd [#allocation4], 0
      %s31 = sshll.u32 [#allocation5], 4
      %s32 = int_to_ptr.vmem [resolvable:$true] %s31
      %s33 = sshll.u32 %s1, 4
      %s34 = int_to_ptr.hbm [resolvable:$true] %s33
      %36 = dma.vmem_to_hbm [thread:$0]  %s32, 128, %s34, [#allocation4]
    $region13: #{tpu_custom_call.1} parent=1 // pred_fallthru
      _
    // Predicated region
    $region14: #{tpu_custom_call.1} parent=1 // pred_check
      _
    $region15: #{tpu_custom_call.1} parent=1 // pred_check_branch
      %38 = sbr.rel (0) target = $region17
    $region16: #{tpu_custom_call.1} parent=1 // pred_region
      %40 = dma.done [#allocation4], 128
    $region17: #{tpu_custom_call.1} parent=1 // pred_fallthru
      _
    %41 = vsyncpa [#allocation3], 1
    %42 = vsyncpa [#allocation4], 1

// kernel: tpu_custom_call.1
$region0: #{tpu_custom_call.1}
  #allocation0 [shape = 'u32[]', space=smem, size = 0x4, offset = 0x4, fixed_abs, tag = 'smem constant byte address 0x4 - core index']
  #allocation1 [shape = 'u32[72,128]{1,0:T(1,128)}', space=vmem, size = 0x9000, scoped, tag = 'internal scratch']
  %s0 = inlined_call_operand.vmem [shape: bf16[2,128,9], index: 0, kind: input, shape index: {}]
  %s1 = inlined_call_operand.vmem [shape: bf16[9,128], index: 1, kind: input, shape index: {}]
  %s2 = inlined_call_operand.vmem [shape: f32[1,128], index: 2, kind: input, shape index: {}]
  %s3 = inlined_call_operand.vmem [shape: f32[1,128], index: 3, kind: input, shape index: {}]
  %s4 = inlined_call_operand.vmem [shape: bf16[128,128], index: 4, kind: input, shape index: {}]
  %s5 = inlined_call_operand.vmem [shape: f32[1,128], index: 5, kind: input, shape index: {}]
  %s6 = inlined_call_operand.vmem [shape: f32[1,128], index: 6, kind: input, shape index: {}]
  %s7 = inlined_call_operand.hbm [shape: bf16[2,128,128], index: 7, kind: output, shape index: {}]
  %s8 = sld [smem:[#allocation0]]
  $region61: #{tpu_custom_call.1} parent=0
    _
  %s10 = ssub.s32 1, %s8
  %s11 = scalar_select 0, %s10, %s8
  $region1: #{tpu_custom_call.1} parent=0
    #allocation2 [shape = 'u8[65536]{0}', space=vmem, size = 0x10000, scoped, tag = 'output window, operand 0']
    #allocation3 [shape = 's32[2]{0}', space=sflag, size = 0x8, scoped, tag = 'scoped memory for tpu_custom_call.1']
    %12 = vsyncpa [#allocation3], 0
    %s13 = scalar_lea.sflag [#allocation3], 1
    %14 = vsyncpa %s13, 0
    loop: start=0, step=1, limit=4
    $region2: #{tpu_custom_call.1} parent=1 // loop_pre_header
      _
    $region3: #{tpu_custom_call.1} parent=1 // loop_header
      %s16 = sphi 0, %s20
      %p17 = scmp.ge.s32.totalorder %s16, 4
      %s23 = sphi 0, %s35
      %s24 = sphi 0, %s31
      %s25 = sphi 0, %s23
      %s26 = sphi 0, %s24
      %s27 = sphi 0, %s25
      %s28 = sphi 0, %s26
      %s40 = sphi 0, %s42
      %s43 = sphi 0, %s40
      %s44 = sphi 0, %s43
      %s60 = sphi 0, %s44
      %s64 = sphi 0, %s64
      %s66 = sphi 0, %s64
      %s67 = sphi 0, %s66
      %s81 = sphi 0, %s67
      %s85 = sphi 0, %s85
      %s87 = sphi 0, %s85
      %s88 = sphi 0, %s87
      %s102 = sphi 0, %s88
      %s106 = sphi 0, %s106
      %s108 = sphi 0, %s106
      %s109 = sphi 0, %s108
      %s123 = sphi 0, %s109
      %s127 = sphi 0, %s127
      %s129 = sphi 0, %s127
      %s130 = sphi 0, %s129
      %s144 = sphi 0, %s130
      %s148 = sphi 0, %s148
      %s150 = sphi 0, %s148
      %s151 = sphi 0, %s150
      %s165 = sphi 0, %s151
      %s169 = sphi 0, %s169
      %s171 = sphi 0, %s169
      %s172 = sphi 0, %s171
      %s186 = sphi 0, %s172
      %s194 = sphi 0, %s196
      %s197 = sphi 0, %s194
      %s198 = sphi 0, %s197
      %s214 = sphi 0, %s198
    $region4: #{tpu_custom_call.1} parent=1 // loop_header_branch
      %19 = sbr.rel (%p17) target = $region8
    $region5: #{tpu_custom_call.1} parent=1 // loop_body
      %s21 = ssub.s32 %s16, 1
      %s22 = ssub.s32 %s16, 2
      %s29 = sadd.s32 1, %s24
      %p30 = scmp.ge.s32.totalorder %s29, 1
      %s31 = scalar_select %p30, 0, %s29
      %s32 = sadd.s32 1, %s23
      %s33 = scalar_select %p30, %s32, %s23
      %p34 = scmp.ge.s32.totalorder %s33, 2
      %s35 = scalar_select %p34, 0, %s33
      %s36 = ssub.s32 %s23, %s35
      %s37 = ssub.s32 %s24, %s31
      %s38 = sor.u32 %s36, %s37
      %p39 = scmp.eq.s32.totalorder %s38, 0
      %s41 = sadd.s32 %s40, 1
      %s42 = scalar_select %p39, %s40, %s41
      %p45 = pneg %p39
      %p46 = scmp.eq.s32.totalorder %s16, 1
      %p47 = por %p45, %p46
      %p48 = scmp.ne.s32.totalorder %s40, %s43
      %p49 = scmp.eq.s32.totalorder %s16, 0
      %p50 = por %p48, %p49
      %p51 = scmp.ne.s32.totalorder %s40, %s43
      %p52 = scmp.eq.s32.totalorder %s21, 1
      %p53 = por %p51, %p52
      %p54 = scmp.ne.s32.totalorder %s43, %s44
      %p55 = scmp.eq.s32.totalorder %s21, 0
      %p56 = por %p54, %p55
      %p57 = scmp.ne.s32.totalorder %s43, %s44
      %p58 = scmp.eq.s32.totalorder %s22, 1
      %p59 = por %p57, %p58
      %p61 = scmp.ne.s32.totalorder %s44, %s60
      %p62 = scmp.eq.s32.totalorder %s22, 0
      %p63 = por %p61, %p62
      %s65 = sadd.s32 %s64, 1
      %p68 = scmp.eq.s32.totalorder %s16, 1
      %p69 = scmp.ne.s32.totalorder %s64, %s66
      %p70 = scmp.eq.s32.totalorder %s16, 0
      %p71 = por %p69, %p70
      %p72 = scmp.ne.s32.totalorder %s64, %s66
      %p73 = scmp.eq.s32.totalorder %s21, 1
      %p74 = por %p72, %p73
      %p75 = scmp.ne.s32.totalorder %s66, %s67
      %p76 = scmp.eq.s32.totalorder %s21, 0
      %p77 = por %p75, %p76
      %p78 = scmp.ne.s32.totalorder %s66, %s67
      %p79 = scmp.eq.s32.totalorder %s22, 1
      %p80 = por %p78, %p79
      %p82 = scmp.ne.s32.totalorder %s67, %s81
      %p83 = scmp.eq.s32.totalorder %s22, 0
      %p84 = por %p82, %p83
      %s86 = sadd.s32 %s85, 1
      %p89 = scmp.eq.s32.totalorder %s16, 1
      %p90 = scmp.ne.s32.totalorder %s85, %s87
      %p91 = scmp.eq.s32.totalorder %s16, 0
      %p92 = por %p90, %p91
      %p93 = scmp.ne.s32.totalorder %s85, %s87
      %p94 = scmp.eq.s32.totalorder %s21, 1
      %p95 = por %p93, %p94
      %p96 = scmp.ne.s32.totalorder %s87, %s88
      %p97 = scmp.eq.s32.totalorder %s21, 0
      %p98 = por %p96, %p97
      %p99 = scmp.ne.s32.totalorder %s87, %s88
      %p100 = scmp.eq.s32.totalorder %s22, 1
      %p101 = por %p99, %p100
      %p103 = scmp.ne.s32.totalorder %s88, %s102
      %p104 = scmp.eq.s32.totalorder %s22, 0
      %p105 = por %p103, %p104
      %s107 = sadd.s32 %s106, 1
      %p110 = scmp.eq.s32.totalorder %s16, 1
      %p111 = scmp.ne.s32.totalorder %s106, %s108
      %p112 = scmp.eq.s32.totalorder %s16, 0
      %p113 = por %p111, %p112
      %p114 = scmp.ne.s32.totalorder %s106, %s108
      %p115 = scmp.eq.s32.totalorder %s21, 1
      %p116 = por %p114, %p115
      %p117 = scmp.ne.s32.totalorder %s108, %s109
      %p118 = scmp.eq.s32.totalorder %s21, 0
      %p119 = por %p117, %p118
      %p120 = scmp.ne.s32.totalorder %s108, %s109
      %p121 = scmp.eq.s32.totalorder %s22, 1
      %p122 = por %p120, %p121
      %p124 = scmp.ne.s32.totalorder %s109, %s123
      %p125 = scmp.eq.s32.totalorder %s22, 0
      %p126 = por %p124, %p125
      %s128 = sadd.s32 %s127, 1
      %p131 = scmp.eq.s32.totalorder %s16, 1
      %p132 = scmp.ne.s32.totalorder %s127, %s129
      %p133 = scmp.eq.s32.totalorder %s16, 0
      %p134 = por %p132, %p133
      %p135 = scmp.ne.s32.totalorder %s127, %s129
      %p136 = scmp.eq.s32.totalorder %s21, 1
      %p137 = por %p135, %p136
      %p138 = scmp.ne.s32.totalorder %s129, %s130
      %p139 = scmp.eq.s32.totalorder %s21, 0
      %p140 = por %p138, %p139
      %p141 = scmp.ne.s32.totalorder %s129, %s130
      %p142 = scmp.eq.s32.totalorder %s22, 1
      %p143 = por %p141, %p142
      %p145 = scmp.ne.s32.totalorder %s130, %s144
      %p146 = scmp.eq.s32.totalorder %s22, 0
      %p147 = por %p145, %p146
      %s149 = sadd.s32 %s148, 1
      %p152 = scmp.eq.s32.totalorder %s16, 1
      %p153 = scmp.ne.s32.totalorder %s148, %s150
      %p154 = scmp.eq.s32.totalorder %s16, 0
      %p155 = por %p153, %p154
      %p156 = scmp.ne.s32.totalorder %s148, %s150
      %p157 = scmp.eq.s32.totalorder %s21, 1
      %p158 = por %p156, %p157
      %p159 = scmp.ne.s32.totalorder %s150, %s151
      %p160 = scmp.eq.s32.totalorder %s21, 0
      %p161 = por %p159, %p160
      %p162 = scmp.ne.s32.totalorder %s150, %s151
      %p163 = scmp.eq.s32.totalorder %s22, 1
      %p164 = por %p162, %p163
      %p166 = scmp.ne.s32.totalorder %s151, %s165
      %p167 = scmp.eq.s32.totalorder %s22, 0
      %p168 = por %p166, %p167
      %s170 = sadd.s32 %s169, 1
      %p173 = scmp.eq.s32.totalorder %s16, 1
      %p174 = scmp.ne.s32.totalorder %s169, %s171
      %p175 = scmp.eq.s32.totalorder %s16, 0
      %p176 = por %p174, %p175
      %p177 = scmp.ne.s32.totalorder %s169, %s171
      %p178 = scmp.eq.s32.totalorder %s21, 1
      %p179 = por %p177, %p178
      %p180 = scmp.ne.s32.totalorder %s171, %s172
      %p181 = scmp.eq.s32.totalorder %s21, 0
      %p182 = por %p180, %p181
      %p183 = scmp.ne.s32.totalorder %s171, %s172
      %p184 = scmp.eq.s32.totalorder %s22, 1
      %p185 = por %p183, %p184
      %p187 = scmp.ne.s32.totalorder %s172, %s186
      %p188 = scmp.eq.s32.totalorder %s22, 0
      %p189 = por %p187, %p188
      %s190 = ssub.s32 %s23, %s35
      %s191 = ssub.s32 %s24, %s31
      %s192 = sor.u32 %s190, %s191
      %p193 = scmp.eq.s32.totalorder %s192, 0
      %s195 = sadd.s32 %s194, 1
      %s196 = scalar_select %p193, %s194, %s195
      %p199 = pneg %p193
      %p200 = scmp.eq.s32.totalorder %s16, 1
      %p201 = por %p199, %p200
      %p202 = scmp.ne.s32.totalorder %s194, %s197
      %p203 = scmp.eq.s32.totalorder %s16, 0
      %p204 = por %p202, %p203
      %p205 = scmp.ne.s32.totalorder %s194, %s197
      %p206 = scmp.eq.s32.totalorder %s21, 1
      %p207 = por %p205, %p206
      %p208 = scmp.ne.s32.totalorder %s197, %s198
      %p209 = scmp.eq.s32.totalorder %s21, 0
      %p210 = por %p208, %p209
      %p211 = scmp.ne.s32.totalorder %s197, %s198
      %p212 = scmp.eq.s32.totalorder %s22, 1
      %p213 = por %p211, %p212
      %p215 = scmp.ne.s32.totalorder %s198, %s214
      %p216 = scmp.eq.s32.totalorder %s22, 0
      %p217 = por %p215, %p216
      %p218 = scmp.le.s32.totalorder 1, %s16
      %p219 = scmp.lt.s32.totalorder %s16, 3
      %p220 = pnand %p218, %p219
      %p221 = pneg %p220
      // Predicated region
      $region9: #{tpu_custom_call.1} parent=5 // pred_check
        _
      $region10: #{tpu_custom_call.1} parent=5 // pred_check_branch
        %223 = sbr.rel (%p220) target = $region12
      $region11: #{tpu_custom_call.1} parent=5 // pred_region
        %s224 = ssub.s32 %s16, 1
        // Predicated region
        $region13: #{tpu_custom_call.1} parent=11 // pred_check
          %p225 = pneg %p77
        $region14: #{tpu_custom_call.1} parent=11 // pred_check_branch
          %227 = sbr.rel (%p225) target = $region16
        $region15: #{tpu_custom_call.1} parent=11 // pred_region
          _
        $region16: #{tpu_custom_call.1} parent=11 // pred_fallthru
          _
        // Predicated region
        $region17: #{tpu_custom_call.1} parent=11 // pred_check
          %p228 = pneg %p98
        $region18: #{tpu_custom_call.1} parent=11 // pred_check_branch
          %230 = sbr.rel (%p228) target = $region20
        $region19: #{tpu_custom_call.1} parent=11 // pred_region
          _
        $region20: #{tpu_custom_call.1} parent=11 // pred_fallthru
          _
        // Predicated region
        $region21: #{tpu_custom_call.1} parent=11 // pred_check
          %p231 = pneg %p119
        $region22: #{tpu_custom_call.1} parent=11 // pred_check_branch
          %233 = sbr.rel (%p231) target = $region24
        $region23: #{tpu_custom_call.1} parent=11 // pred_region
          _
        $region24: #{tpu_custom_call.1} parent=11 // pred_fallthru
          _
        // Predicated region
        $region25: #{tpu_custom_call.1} parent=11 // pred_check
          %p234 = pneg %p140
        $region26: #{tpu_custom_call.1} parent=11 // pred_check_branch
          %236 = sbr.rel (%p234) target = $region28
        $region27: #{tpu_custom_call.1} parent=11 // pred_region
          _
        $region28: #{tpu_custom_call.1} parent=11 // pred_fallthru
          _
        // Predicated region
        $region29: #{tpu_custom_call.1} parent=11 // pred_check
          %p237 = pneg %p161
        $region30: #{tpu_custom_call.1} parent=11 // pred_check_branch
          %239 = sbr.rel (%p237) target = $region32
        $region31: #{tpu_custom_call.1} parent=11 // pred_region
          _
        $region32: #{tpu_custom_call.1} parent=11 // pred_fallthru
          _
        // Predicated region
        $region33: #{tpu_custom_call.1} parent=11 // pred_check
          %p240 = pneg %p182
        $region34: #{tpu_custom_call.1} parent=11 // pred_check_branch
          %242 = sbr.rel (%p240) target = $region36
        $region35: #{tpu_custom_call.1} parent=11 // pred_region
          _
        $region36: #{tpu_custom_call.1} parent=11 // pred_fallthru
          _
      $region12: #{tpu_custom_call.1} parent=5 // pred_fallthru
        _
      %p243 = scmp.lt.s32.totalorder %s16, 2
      // Predicated region
      $region37: #{tpu_custom_call.1} parent=5 // pred_check
        %p244 = pneg %p243
      $region38: #{tpu_custom_call.1} parent=5 // pred_check_branch
        %246 = sbr.rel (%p244) target = $region40
      $region39: #{tpu_custom_call.1} parent=5 // pred_region
        // Predicated region
        $region41: #{tpu_custom_call.1} parent=39 // pred_check
          %p247 = pneg %p50
        $region42: #{tpu_custom_call.1} parent=39 // pred_check_branch
          %249 = sbr.rel (%p247) target = $region44
        $region43: #{tpu_custom_call.1} parent=39 // pred_region
          %s250 = smul.u32 16, %s24
          %p251 = scmp.lt.s32.totalorder %s23, 1
          %s252 = scalar_select %p251, %s23, 1
          %p253 = scmp.lt.s32.totalorder %s250, 15
          %s254 = scalar_select %p253, %s250, 15
          %s255 = smul.addr %s252, 16
          %s256 = sadd.s32 %s254, %s255
          %s257 = smul.addr %s256, 4
          %s258 = scalar_lea.vmem %s0, %s257
          %s259 = smul.u32 16, %s24
        $region44: #{tpu_custom_call.1} parent=39 // pred_fallthru
          _
      $region40: #{tpu_custom_call.1} parent=5 // pred_fallthru
        _
      %p260 = scmp.le.s32.totalorder 1, %s16
      %p261 = scmp.lt.s32.totalorder %s16, 3
      %p262 = pnand %p260, %p261
      %p263 = pneg %p262
      // Predicated region
      $region45: #{tpu_custom_call.1} parent=5 // pred_check
        _
      $region46: #{tpu_custom_call.1} parent=5 // pred_check_branch
        %265 = sbr.rel (%p262) target = $region48
      $region47: #{tpu_custom_call.1} parent=5 // pred_region
        %s266 = ssub.s32 %s16, 1
        %s267 = smul.u32 16, %s26
        %p268 = scmp.lt.s32.totalorder %s25, 1
        %s269 = scalar_select %p268, %s25, 1
        %p270 = scmp.lt.s32.totalorder %s267, 15
        %s271 = scalar_select %p270, %s267, 15
        %s272 = smul.addr %s269, 16
        %s273 = sadd.s32 %s271, %s272
        %s274 = smul.addr %s273, 4
        %s275 = scalar_lea.vmem %s0, %s274
        %p276 = pneg %p56
        %p277 = pneg %p53
        %p278 = pneg %p77
        %p279 = pneg %p74
        %p280 = pneg %p98
        %p281 = pneg %p95
        %p282 = pneg %p119
        %p283 = pneg %p116
        %p284 = pneg %p140
        %p285 = pneg %p137
        %p286 = pneg %p161
        %p287 = pneg %p158
        %p288 = pneg %p182
        %p289 = pneg %p179
        %p290 = pneg %p210
        %p291 = pneg %p207
        %s292 = sand.u32 %s197, 1
        %s293 = scalar_lea.sflag [#allocation3], %s292
        %s294 = sand.u32 %s197, 1
        %s295 = smul.addr %s294, 64
        %s296 = scalar_lea.vmem [#allocation2], %s295
        %s297 = smul.u32 16, %s26
        %p298 = scmp.lt.s32.totalorder %s25, 1
        %s299 = scalar_select %p298, %s25, 1
        %p300 = scmp.lt.s32.totalorder %s297, 15
        %s301 = scalar_select %p300, %s297, 15
        %s302 = smul.addr %s299, 16
        %s303 = sadd.s32 %s301, %s302
        %s304 = smul.addr %s303, 4
        %s305 = scalar_lea.vmem %s0, %s304
        %s306 = smul.u32 16, %s26
        %s307 = smul.u32 16, %s26
        %v309 = vld [vmem:[%s305] sm:$0xf]
        %v310 = vld [vmem:[%s305 + $0x4] sm:$0xf]
        %v311 = vld [vmem:[%s305 + $0x8] sm:$0xf]
        %v312 = vld [vmem:[%s305 + $0xc] sm:$0xf]
        %v313 = vld [vmem:[%s305 + $0x10] sm:$0xf]
        %v314 = vld [vmem:[%s305 + $0x14] sm:$0xf]
        %v315 = vld [vmem:[%s305 + $0x18] sm:$0xf]
        %v316 = vld [vmem:[%s305 + $0x1c] sm:$0xf]
        %v317 = vld [vmem:[%s305 + $0x20] sm:$0xf]
        %v318 = vld [vmem:[%s305 + $0x24] sm:$0xf]
        %v319 = vld [vmem:[%s305 + $0x28] sm:$0xf]
        %v320 = vld [vmem:[%s305 + $0x2c] sm:$0xf]
        %v321 = vld [vmem:[%s305 + $0x30] sm:$0xf]
        %v322 = vld [vmem:[%s305 + $0x34] sm:$0xf]
        %v323 = vld [vmem:[%s305 + $0x38] sm:$0xf]
        %v324 = vld [vmem:[%s305 + $0x3c] sm:$0xf]
        %v325 = vld [vmem:[%s1] sm:$0xf]
        %v326 = vld [vmem:[%s1 + $0x4] sm:$0x1]
        %v343 = vunpack.c.l.b16 %v309
        %v344 = vunpack.c.l.b16 %v310
        %v345 = vunpack.c.l.b16 %v311
        %v346 = vunpack.c.l.b16 %v312
        %v347 = vunpack.c.l.b16 %v313
        %v348 = vunpack.c.l.b16 %v314
        %v349 = vunpack.c.l.b16 %v315
        %v350 = vunpack.c.l.b16 %v316
        %v351 = vunpack.c.l.b16 %v317
        %v352 = vunpack.c.l.b16 %v318
        %v353 = vunpack.c.l.b16 %v319
        %v354 = vunpack.c.l.b16 %v320
        %v355 = vunpack.c.l.b16 %v321
        %v356 = vunpack.c.l.b16 %v322
        %v357 = vunpack.c.l.b16 %v323
        %v358 = vunpack.c.l.b16 %v324
        %v359 = vpack.c.b16 %v344, %v343
        %v360 = vpack.c.b16 %v346, %v345
        %v361 = vpack.c.b16 %v348, %v347
        %v362 = vpack.c.b16 %v350, %v349
        %v363 = vpack.c.b16 %v352, %v351
        %v364 = vpack.c.b16 %v354, %v353
        %v365 = vpack.c.b16 %v356, %v355
        %v366 = vpack.c.b16 %v358, %v357
        %v369 = vunpack.c.l.b16 %v325
        %v370 = vunpack.c.l.b16 %v326
        %v371 = vpack.c.b16 %v370, %v369
        %vm372 = vcmask 72704
        %v374 = vsel %vm372, %v359, 0
        %v377 = vsel %vm372, %v360, 0
        %v380 = vsel %vm372, %v361, 0
        %v383 = vsel %vm372, %v362, 0
        %v386 = vsel %vm372, %v363, 0
        %v389 = vsel %vm372, %v364, 0
        %v392 = vsel %vm372, %v365, 0
        %v395 = vsel %vm372, %v366, 0
        %vm397 = vcmask 1043456
        %vm398 = vcmask 1044480
        %v399 = vsel %vm397, 4294967295, 65535
        %v400 = vsel %vm398, %v399, 0
        %v402 = vand.u32 %v371, %v400
        %404 = vmatpush.bf16.msra.mxu0 0
        %405 = vmatpush.bf16.msra.mxu0 0
        %406 = vmatpush.bf16.msra.mxu0 0
        %407 = vmatpush.bf16.msra.mxu0 0
        %408 = vmatpush.bf16.msra.mxu0 0
        %409 = vmatpush.bf16.msra.mxu0 0
        %410 = vmatpush.bf16.msra.mxu0 0
        %411 = vmatpush.bf16.msra.mxu0 %v402
        %412 = vmatmul.bf16.gmra.mxu0 %v374
        %v413 = vpop.f32.mrf.mxu0
        %v414 = vadd.f32 0.0, %v413
        %v415 = vpop.f32.mrf.mxu0
        %v416 = vadd.f32 0.0, %v415
        %417 = vmatmul.bf16.gmra.mxu0 %v377
        %v418 = vpop.f32.mrf.mxu0
        %v419 = vadd.f32 0.0, %v418
        %v420 = vpop.f32.mrf.mxu0
        %v421 = vadd.f32 0.0, %v420
        %422 = vmatmul.bf16.gmra.mxu0 %v380
        %v423 = vpop.f32.mrf.mxu0
        %v424 = vadd.f32 0.0, %v423
        %v425 = vpop.f32.mrf.mxu0
        %v426 = vadd.f32 0.0, %v425
        %427 = vmatmul.bf16.gmra.mxu0 %v383
        %v428 = vpop.f32.mrf.mxu0
        %v429 = vadd.f32 0.0, %v428
        %v430 = vpop.f32.mrf.mxu0
        %v431 = vadd.f32 0.0, %v430
        %432 = vmatmul.bf16.gmra.mxu0 %v386
        %v433 = vpop.f32.mrf.mxu0
        %v434 = vadd.f32 0.0, %v433
        %v435 = vpop.f32.mrf.mxu0
        %v436 = vadd.f32 0.0, %v435
        %437 = vmatmul.bf16.gmra.mxu0 %v389
        %v438 = vpop.f32.mrf.mxu0
        %v439 = vadd.f32 0.0, %v438
        %v440 = vpop.f32.mrf.mxu0
        %v441 = vadd.f32 0.0, %v440
        %442 = vmatmul.bf16.gmra.mxu0 %v392
        %v443 = vpop.f32.mrf.mxu0
        %v444 = vadd.f32 0.0, %v443
        %v445 = vpop.f32.mrf.mxu0
        %v446 = vadd.f32 0.0, %v445
        %447 = vmatmul.bf16.gmra.mxu0 %v395
        %v448 = vpop.f32.mrf.mxu0
        %v449 = vadd.f32 0.0, %v448
        %v450 = vpop.f32.mrf.mxu0
        %v451 = vadd.f32 0.0, %v450
        %452 = vdwg.mxu0
        %v453 = vld [vmem:[%s2] sm:$0x1]
        %v455 = vperm.slane %v453, 0
        %v457 = vmul.f32 %v414, %v455
        %v458 = vmul.f32 %v416, %v455
        %v459 = vmul.f32 %v419, %v455
        %v460 = vmul.f32 %v421, %v455
        %v461 = vmul.f32 %v424, %v455
        %v462 = vmul.f32 %v426, %v455
        %v463 = vmul.f32 %v429, %v455
        %v464 = vmul.f32 %v431, %v455
        %v465 = vmul.f32 %v434, %v455
        %v466 = vmul.f32 %v436, %v455
        %v467 = vmul.f32 %v439, %v455
        %v468 = vmul.f32 %v441, %v455
        %v469 = vmul.f32 %v444, %v455
        %v470 = vmul.f32 %v446, %v455
        %v471 = vmul.f32 %v449, %v455
        %v472 = vmul.f32 %v451, %v455
        %v473 = vld [vmem:[%s3] sm:$0x1]
        %v475 = vperm.slane %v473, 0
        %v477 = vadd.f32 %v457, %v475
        %v478 = vadd.f32 %v458, %v475
        %v479 = vadd.f32 %v459, %v475
        %v480 = vadd.f32 %v460, %v475
        %v481 = vadd.f32 %v461, %v475
        %v482 = vadd.f32 %v462, %v475
        %v483 = vadd.f32 %v463, %v475
        %v484 = vadd.f32 %v464, %v475
        %v485 = vadd.f32 %v465, %v475
        %v486 = vadd.f32 %v466, %v475
        %v487 = vadd.f32 %v467, %v475
        %v488 = vadd.f32 %v468, %v475
        %v489 = vadd.f32 %v469, %v475
        %v490 = vadd.f32 %v470, %v475
        %v491 = vadd.f32 %v471, %v475
        %v492 = vadd.f32 %v472, %v475
        %v493 = vmax.f32 %v477, 0.0
        %v494 = vmax.f32 %v478, 0.0
        %v495 = vmax.f32 %v479, 0.0
        %v496 = vmax.f32 %v480, 0.0
        %v497 = vmax.f32 %v481, 0.0
        %v498 = vmax.f32 %v482, 0.0
        %v499 = vmax.f32 %v483, 0.0
        %v500 = vmax.f32 %v484, 0.0
        %v501 = vmax.f32 %v485, 0.0
        %v502 = vmax.f32 %v486, 0.0
        %v503 = vmax.f32 %v487, 0.0
        %v504 = vmax.f32 %v488, 0.0
        %v505 = vmax.f32 %v489, 0.0
        %v506 = vmax.f32 %v490, 0.0
        %v507 = vmax.f32 %v491, 0.0
        %v508 = vmax.f32 %v492, 0.0
        %v509 = vpack.c.bf16 %v494, %v493
        %v510 = vpack.c.bf16 %v496, %v495
        %v511 = vpack.c.bf16 %v498, %v497
        %v512 = vpack.c.bf16 %v500, %v499
        %v513 = vpack.c.bf16 %v502, %v501
        %v514 = vpack.c.bf16 %v504, %v503
        %v515 = vpack.c.bf16 %v506, %v505
        %v516 = vpack.c.bf16 %v508, %v507
        %v517 = vld [vmem:[%s4] sm:$0xf]
        %v518 = vld [vmem:[%s4 + $0x4] sm:$0xf]
        %v519 = vld [vmem:[%s4 + $0x8] sm:$0xf]
        %v520 = vld [vmem:[%s4 + $0xc] sm:$0xf]
        %v521 = vld [vmem:[%s4 + $0x10] sm:$0xf]
        %v522 = vld [vmem:[%s4 + $0x14] sm:$0xf]
        %v523 = vld [vmem:[%s4 + $0x18] sm:$0xf]
        %v524 = vld [vmem:[%s4 + $0x1c] sm:$0xf]
        %v525 = vld [vmem:[%s4 + $0x20] sm:$0xf]
        %v526 = vld [vmem:[%s4 + $0x24] sm:$0xf]
        %v527 = vld [vmem:[%s4 + $0x28] sm:$0xf]
        %v528 = vld [vmem:[%s4 + $0x2c] sm:$0xf]
        %v529 = vld [vmem:[%s4 + $0x30] sm:$0xf]
        %v530 = vld [vmem:[%s4 + $0x34] sm:$0xf]
        %v531 = vld [vmem:[%s4 + $0x38] sm:$0xf]
        %v532 = vld [vmem:[%s4 + $0x3c] sm:$0xf]
        %v549 = vunpack.c.l.b16 %v517
        %v550 = vunpack.c.l.b16 %v518
        %v551 = vunpack.c.l.b16 %v519
        %v552 = vunpack.c.l.b16 %v520
        %v553 = vunpack.c.l.b16 %v521
        %v554 = vunpack.c.l.b16 %v522
        %v555 = vunpack.c.l.b16 %v523
        %v556 = vunpack.c.l.b16 %v524
        %v557 = vunpack.c.l.b16 %v525
        %v558 = vunpack.c.l.b16 %v526
        %v559 = vunpack.c.l.b16 %v527
        %v560 = vunpack.c.l.b16 %v528
        %v561 = vunpack.c.l.b16 %v529
        %v562 = vunpack.c.l.b16 %v530
        %v563 = vunpack.c.l.b16 %v531
        %v564 = vunpack.c.l.b16 %v532
        %v565 = vpack.c.b16 %v550, %v549
        %v566 = vpack.c.b16 %v552, %v551
        %v567 = vpack.c.b16 %v554, %v553
        %v568 = vpack.c.b16 %v556, %v555
        %v569 = vpack.c.b16 %v558, %v557
        %v570 = vpack.c.b16 %v560, %v559
        %v571 = vpack.c.b16 %v562, %v561
        %v572 = vpack.c.b16 %v564, %v563
        %581 = vmatpush.bf16.msra.mxu0 %v572
        %582 = vmatpush.bf16.msra.mxu0 %v571
        %583 = vmatpush.bf16.msra.mxu0 %v570
        %584 = vmatpush.bf16.msra.mxu0 %v569
        %585 = vmatpush.bf16.msra.mxu0 %v568
        %586 = vmatpush.bf16.msra.mxu0 %v567
        %587 = vmatpush.bf16.msra.mxu0 %v566
        %588 = vmatpush.bf16.msra.mxu0 %v565
        %589 = vmatmul.bf16.gmra.mxu0 %v509
        %v590 = vpop.f32.mrf.mxu0
        %v591 = vadd.f32 0.0, %v590
        %v592 = vpop.f32.mrf.mxu0
        %v593 = vadd.f32 0.0, %v592
        %594 = vmatmul.bf16.gmra.mxu0 %v510
        %v595 = vpop.f32.mrf.mxu0
        %v596 = vadd.f32 0.0, %v595
        %v597 = vpop.f32.mrf.mxu0
        %v598 = vadd.f32 0.0, %v597
        %599 = vmatmul.bf16.gmra.mxu0 %v511
        %v600 = vpop.f32.mrf.mxu0
        %v601 = vadd.f32 0.0, %v600
        %v602 = vpop.f32.mrf.mxu0
        %v603 = vadd.f32 0.0, %v602
        %604 = vmatmul.bf16.gmra.mxu0 %v512
        %v605 = vpop.f32.mrf.mxu0
        %v606 = vadd.f32 0.0, %v605
        %v607 = vpop.f32.mrf.mxu0
        %v608 = vadd.f32 0.0, %v607
        %609 = vmatmul.bf16.gmra.mxu0 %v513
        %v610 = vpop.f32.mrf.mxu0
        %v611 = vadd.f32 0.0, %v610
        %v612 = vpop.f32.mrf.mxu0
        %v613 = vadd.f32 0.0, %v612
        %614 = vmatmul.bf16.gmra.mxu0 %v514
        %v615 = vpop.f32.mrf.mxu0
        %v616 = vadd.f32 0.0, %v615
        %v617 = vpop.f32.mrf.mxu0
        %v618 = vadd.f32 0.0, %v617
        %619 = vmatmul.bf16.gmra.mxu0 %v515
        %v620 = vpop.f32.mrf.mxu0
        %v621 = vadd.f32 0.0, %v620
        %v622 = vpop.f32.mrf.mxu0
        %v623 = vadd.f32 0.0, %v622
        %624 = vmatmul.bf16.gmra.mxu0 %v516
        %v625 = vpop.f32.mrf.mxu0
        %v626 = vadd.f32 0.0, %v625
        %v627 = vpop.f32.mrf.mxu0
        %v628 = vadd.f32 0.0, %v627
        %629 = vdwg.mxu0
        %v630 = vld [vmem:[%s5] sm:$0x1]
        %v632 = vperm.slane %v630, 0
        %v634 = vmul.f32 %v591, %v632
        %v635 = vmul.f32 %v593, %v632
        %v636 = vmul.f32 %v596, %v632
        %v637 = vmul.f32 %v598, %v632
        %v638 = vmul.f32 %v601, %v632
        %v639 = vmul.f32 %v603, %v632
        %v640 = vmul.f32 %v606, %v632
        %v641 = vmul.f32 %v608, %v632
        %v642 = vmul.f32 %v611, %v632
        %v643 = vmul.f32 %v613, %v632
        %v644 = vmul.f32 %v616, %v632
        %v645 = vmul.f32 %v618, %v632
        %v646 = vmul.f32 %v621, %v632
        %v647 = vmul.f32 %v623, %v632
        %v648 = vmul.f32 %v626, %v632
        %v649 = vmul.f32 %v628, %v632
        %v650 = vld [vmem:[%s6] sm:$0x1]
        %v652 = vperm.slane %v650, 0
        %v654 = vadd.f32 %v634, %v652
        %v655 = vadd.f32 %v635, %v652
        %v656 = vadd.f32 %v636, %v652
        %v657 = vadd.f32 %v637, %v652
        %v658 = vadd.f32 %v638, %v652
        %v659 = vadd.f32 %v639, %v652
        %v660 = vadd.f32 %v640, %v652
        %v661 = vadd.f32 %v641, %v652
        %v662 = vadd.f32 %v642, %v652
        %v663 = vadd.f32 %v643, %v652
        %v664 = vadd.f32 %v644, %v652
        %v665 = vadd.f32 %v645, %v652
        %v666 = vadd.f32 %v646, %v652
        %v667 = vadd.f32 %v647, %v652
        %v668 = vadd.f32 %v648, %v652
        %v669 = vadd.f32 %v649, %v652
        %v670 = vmax.f32 %v654, 0.0
        %v671 = vmax.f32 %v655, 0.0
        %v672 = vmax.f32 %v656, 0.0
        %v673 = vmax.f32 %v657, 0.0
        %v674 = vmax.f32 %v658, 0.0
        %v675 = vmax.f32 %v659, 0.0
        %v676 = vmax.f32 %v660, 0.0
        %v677 = vmax.f32 %v661, 0.0
        %v678 = vmax.f32 %v662, 0.0
        %v679 = vmax.f32 %v663, 0.0
        %v680 = vmax.f32 %v664, 0.0
        %v681 = vmax.f32 %v665, 0.0
        %v682 = vmax.f32 %v666, 0.0
        %v683 = vmax.f32 %v667, 0.0
        %v684 = vmax.f32 %v668, 0.0
        %v685 = vmax.f32 %v669, 0.0
        %v686 = vpack.c.bf16 %v670, %v670
        %v687 = vpack.c.bf16 %v671, %v671
        %v688 = vpack.c.bf16 %v672, %v672
        %v689 = vpack.c.bf16 %v673, %v673
        %v690 = vpack.c.bf16 %v674, %v674
        %v691 = vpack.c.bf16 %v675, %v675
        %v692 = vpack.c.bf16 %v676, %v676
        %v693 = vpack.c.bf16 %v677, %v677
        %v694 = vpack.c.bf16 %v678, %v678
        %v695 = vpack.c.bf16 %v679, %v679
        %v696 = vpack.c.bf16 %v680, %v680
        %v697 = vpack.c.bf16 %v681, %v681
        %v698 = vpack.c.bf16 %v682, %v682
        %v699 = vpack.c.bf16 %v683, %v683
        %v700 = vpack.c.bf16 %v684, %v684
        %v701 = vpack.c.bf16 %v685, %v685
        %702 = vst [vmem:[%s296] sm:$0xf] %v686
        %703 = vst [vmem:[%s296 + $0x4] sm:$0xf] %v687
        %704 = vst [vmem:[%s296 + $0x8] sm:$0xf] %v688
        %705 = vst [vmem:[%s296 + $0xc] sm:$0xf] %v689
        %706 = vst [vmem:[%s296 + $0x10] sm:$0xf] %v690
        %707 = vst [vmem:[%s296 + $0x14] sm:$0xf] %v691
        %708 = vst [vmem:[%s296 + $0x18] sm:$0xf] %v692
        %709 = vst [vmem:[%s296 + $0x1c] sm:$0xf] %v693
        %710 = vst [vmem:[%s296 + $0x20] sm:$0xf] %v694
        %711 = vst [vmem:[%s296 + $0x24] sm:$0xf] %v695
        %712 = vst [vmem:[%s296 + $0x28] sm:$0xf] %v696
        %713 = vst [vmem:[%s296 + $0x2c] sm:$0xf] %v697
        %714 = vst [vmem:[%s296 + $0x30] sm:$0xf] %v698
        %715 = vst [vmem:[%s296 + $0x34] sm:$0xf] %v699
        %716 = vst [vmem:[%s296 + $0x38] sm:$0xf] %v700
        %717 = vst [vmem:[%s296 + $0x3c] sm:$0xf] %v701
        %s718 = sand.u32 %s197, 1
        %s719 = scalar_lea.sflag [#allocation3], %s718
        %s720 = sand.u32 %s197, 1
        %s721 = smul.addr %s720, 64
        %s722 = scalar_lea.vmem [#allocation2], %s721
        // Predicated region
        $region49: #{tpu_custom_call.1} parent=47 // pred_check
          %p723 = pneg %p207
        $region50: #{tpu_custom_call.1} parent=47 // pred_check_branch
          %725 = sbr.rel (%p723) target = $region52
        $region51: #{tpu_custom_call.1} parent=47 // pred_region
          %s726 = smul.u32 16, %s26
          %728 = vsyncadd %s719, 0
          %s729 = smul.addr %s25, 16
          %s730 = sadd.s32 %s726, %s729
          %s731 = smul.addr %s730, 4
          %s732 = scalar_lea.hbm %s7, %s731
          %s733 = sshll.u32 %s722, 4
          %s734 = int_to_ptr.vmem [resolvable:$true] %s733
          %s735 = sshll.u32 %s732, 4
          %s736 = int_to_ptr.hbm [resolvable:$true] %s735
          %741 = dma.vmem_to_hbm [thread:$0]  %s734, 1024, %s736, %s719, 64, 64, 4
        $region52: #{tpu_custom_call.1} parent=47 // pred_fallthru
          _
      $region48: #{tpu_custom_call.1} parent=5 // pred_fallthru
        _
      %p742 = scmp.le.s32.totalorder 2, %s16
      // Predicated region
      $region53: #{tpu_custom_call.1} parent=5 // pred_check
        %p743 = pneg %p742
      $region54: #{tpu_custom_call.1} parent=5 // pred_check_branch
        %745 = sbr.rel (%p743) target = $region56
      $region55: #{tpu_custom_call.1} parent=5 // pred_region
        %s746 = ssub.s32 %s16, 2
        // Predicated region
        $region57: #{tpu_custom_call.1} parent=55 // pred_check
          %p747 = pneg %p213
        $region58: #{tpu_custom_call.1} parent=55 // pred_check_branch
          %749 = sbr.rel (%p747) target = $region60
        $region59: #{tpu_custom_call.1} parent=55 // pred_region
          %s750 = sand.u32 %s198, 1
          %s751 = scalar_lea.sflag [#allocation3], %s750
          %s752 = sand.u32 %s198, 1
          %s753 = smul.addr %s752, 64
          %s754 = scalar_lea.vmem [#allocation2], %s753
          %756 = dma.done %s751, 1024
        $region60: #{tpu_custom_call.1} parent=55 // pred_fallthru
          _
      $region56: #{tpu_custom_call.1} parent=5 // pred_fallthru
        _
    $region6: #{tpu_custom_call.1} parent=1 // loop_footer
      %s20 = sadd.s32 1, %s16
    $region7: #{tpu_custom_call.1} parent=1 // loop_footer_branch
      %15 = sbr.rel target = $region3
    $region8: #{tpu_custom_call.1} parent=1 // loop_exit
      _
    %757 = vsyncpa [#allocation3], 1
    %s758 = scalar_lea.sflag [#allocation3], 1
    %759 = vsyncpa %s758, 1

</llo_original>
